<compile_context>
chip_gen: v6e
topology: v6e:2x2x1
jax: 0.10.0
libtpu: 0.0.40
codegen_flags: <defaults>
</compile_context>

<pallas_src>
import jax
import jax.numpy as jnp
from jax.experimental import pallas as pl
from jax.experimental.pallas import tpu as pltpu

_LANE = 128
# Per-buffer tile budget.  in + out, double-buffered => ~4x this in VMEM,
# comfortably under the default scoped VMEM on v5e/v6e/v7x (and well under
# v7x's 64 MiB physical VMEM).
_TILE_BYTES = 4 * 1024 * 1024


def _sublane_for(dtype) -> int:
    """Dtype-native sublane tile (second-to-last dim granularity)."""
    return {4: 8, 2: 16, 1: 32}.get(jnp.dtype(dtype).itemsize, 8)


class Activation:
    """JAX/Pallas mirror of the abstract PyTorch `Activation` base class."""

    def __init__(self, num_features: int):
        self.d = num_features

    # --- subclasses override this with the real activation math ------------
    def _elementwise(self, x):
        # TODO(synk): base-class forward() is NotImplementedError in PyTorch;
        # identity placeholder here — subclasses supply e.g. jax.nn.relu.
        return x

    def _kernel(self, x_ref, o_ref):
        o_ref[...] = self._elementwise(x_ref[...])

    def __call__(self, x: jax.Array) -> jax.Array:
        assert x.shape[-1] == self.d, "last dim must equal num_features"
        # Perf note: the literal base class is an identity and could simply
        # `return x` with no kernel launch; we keep the launch so the tiled
        # elementwise path that concrete subclasses inherit is exercised.

        orig_shape = x.shape
        total = x.size
        dtype = x.dtype
        itemsize = jnp.dtype(dtype).itemsize
        sublane = _sublane_for(dtype)

        # ---- lane-dense flat view: (rows, lanes) with lanes a multiple of 128
        # (elementwise op => any contiguous reshape is legal).  Avoids masked
        # vst.msk partial stores when the original feature dim is < 128.
        lanes = None
        for cand in (2048, 1024, 512, 256, 128):
            if total % cand == 0:
                lanes = cand
                break
        if lanes is None:
            # Odd total size: fall back to (leading, features) whole-block copy.
            lanes = orig_shape[-1]
        rows = total // lanes
        x2 = x.reshape(rows, lanes)

        # ---- row-tile size: multiple of the dtype sublane tile, sized so
        # in+out double-buffered tiles stay well inside scoped VMEM on all gens.
        if lanes % _LANE == 0 and rows >= sublane:
            tm = _TILE_BYTES // (lanes * itemsize)
            tm = max(sublane, min(tm, rows))
            tm = (tm // sublane) * sublane
        else:
            # Block must equal full array dims when not (8,128)-aligned.
            tm = rows

        grid = (pl.cdiv(rows, tm),)

        y2 = pl.pallas_call(
            self._kernel,
            out_shape=jax.ShapeDtypeStruct((rows, lanes), dtype),
            grid=grid,
            in_specs=[pl.BlockSpec((tm, lanes), lambda i: (i, 0))],
            out_specs=pl.BlockSpec((tm, lanes), lambda i: (i, 0)),
            input_output_aliases={0: 0},  # elementwise: reuse x's HBM buffer
            cost_estimate=pl.CostEstimate(
                flops=total, transcendentals=0, bytes_accessed=2 * x.nbytes
            ),
            compiler_params=pltpu.CompilerParams(
                # Row-tile axis is parallel: sharded across the 2 TCs on v7x,
                # no-op on v5e/v6e.
                dimension_semantics=("parallel",),
                # Raise v5e's 16 MiB default; safe on v6e/v7x as well.
                vmem_limit_bytes=32 * 1024 * 1024,
            ),
        )(x2)

        return y2.reshape(orig_shape)


if __name__ == "__main__":
    key = jax.random.PRNGKey(0)
    batch, seq, hidden = 2, 8, 32
    x = jax.random.normal(key, (batch, seq, hidden), dtype=jnp.float32)

    act = Activation(num_features=hidden)
    y = act(x)
    jax.block_until_ready(y)

    # sanity: base-class semantics (identity placeholder) preserve the input
    assert y.shape == x.shape and y.dtype == x.dtype
    assert jnp.allclose(y, x)

    print("KERNEL_OK")
</pallas_src>

<mosaic_0001>
module attributes {stable_mosaic.version = 11 : i64} {
  func.func @_kernel(%arg0: i32, %arg1: memref<1x512xf32, #tpu.memory_space<vmem>>, %arg2: memref<1x512xf32, #tpu.memory_space<vmem>>) attributes {dimension_semantics = [#tpu.dimension_semantics<parallel>], iteration_bounds = array<i64: 1>, scalar_prefetch = 0 : i64, scratch_operands = 0 : i64, tpu.core_type = #tpu.core_type<tc>, window_params = [{transform_indices = @transform_0, window_bounds = array<i64: 1, 512>}, {transform_indices = @transform_1, window_bounds = array<i64: 1, 512>}]} {
    %c0 = arith.constant 0 : index
    %c0_0 = arith.constant 0 : index
    %0 = vector.load %arg1[%c0, %c0_0] : memref<1x512xf32, #tpu.memory_space<vmem>>, vector<1x512xf32>
    %c0_1 = arith.constant 0 : index
    %c0_2 = arith.constant 0 : index
    %1 = vector.load %arg2[%c0_1, %c0_2] : memref<1x512xf32, #tpu.memory_space<vmem>>, vector<1x512xf32>
    tpu.vector_store %arg2[%c0_1, %c0_2], %0 {strides = array<i32>} : memref<1x512xf32, #tpu.memory_space<vmem>>, vector<1x512xf32>,
    return
  }
  func.func @transform_0(%arg0: i32) -> (i32, i32) {
    %c0_i32 = arith.constant 0 : i32
    %c0_i32_0 = arith.constant 0 : i32
    return %arg0, %c0_i32 : i32, i32
  }
  func.func @transform_1(%arg0: i32) -> (i32, i32) {
    %c0_i32 = arith.constant 0 : i32
    %c0_i32_0 = arith.constant 0 : i32
    return %arg0, %c0_i32 : i32, i32
  }
}

</mosaic_0001>

<llo_original>
// kernel: tpu_custom_call.1
$region0: #{tpu_custom_call.1}
  #allocation0 [shape = 'u32[]', space=smem, size = 0x4, offset = 0x4, fixed_abs, tag = 'smem constant byte address 0x4 - core index']
  #allocation1 [shape = 'u32[144,128]{1,0:T(1,128)}', space=vmem, size = 0x12000, scoped, tag = 'internal scratch']
  %s0 = inlined_call_operand.hbm [shape: f32[1,512], index: 0, kind: input, shape index: {}, may-alias: {0,1}]
  %s1 = inlined_call_operand.hbm [shape: f32[1,512], index: 1, kind: output, shape index: {}, may-alias: {0,1}]
  %s2 = sld [smem:[#allocation0]]
  $region18: #{tpu_custom_call.1} parent=0
    _
  %s4 = ssub.s32 1, %s2
  %s5 = scalar_select 0, %s4, %s2
  $region1: #{tpu_custom_call.1} parent=0
    #allocation2 [shape = 'u8[2048]{0}', space=vmem, size = 0x800, scoped, tag = 'input window, operand 0, single buffered']
    #allocation3 [shape = 's32[1]{0}', space=sflag, size = 0x4, scoped, tag = 'scoped memory for tpu_custom_call.1']
    #allocation4 [shape = 's32[1]{0}', space=sflag, size = 0x4, scoped, tag = 'scoped memory for tpu_custom_call.1']
    #allocation5 [shape = 'u8[2048]{0}', space=vmem, size = 0x800, scoped, tag = 'output window, operand 0, single buffered']
    %6 = vsyncpa [#allocation3], 0
    %7 = vsyncpa [#allocation4], 0
    // Predicated region
    $region2: #{tpu_custom_call.1} parent=1 // pred_check
      _
    $region3: #{tpu_custom_call.1} parent=1 // pred_check_branch
      %9 = sbr.rel (0) target = $region5
    $region4: #{tpu_custom_call.1} parent=1 // pred_region
      %s11 = ssub.s32 64, 64
      %12 = vsyncadd [#allocation3], %s11
      %s14 = sshll.u32 [#allocation2], 4
      %s15 = int_to_ptr.vmem [resolvable:$true] %s14
      %17 = dma.hbm_to_vmem [thread:$0]  %s0, 64, %s15, [#allocation3]
    $region5: #{tpu_custom_call.1} parent=1 // pred_fallthru
      _
    // Predicated region
    $region6: #{tpu_custom_call.1} parent=1 // pred_check
      _
    $region7: #{tpu_custom_call.1} parent=1 // pred_check_branch
      %19 = sbr.rel (0) target = $region9
    $region8: #{tpu_custom_call.1} parent=1 // pred_region
      %20 = dma.done [#allocation3], 64
    $region9: #{tpu_custom_call.1} parent=1 // pred_fallthru
      _
    %v21 = vld [vmem:[#allocation2] sm:$0xf]
    %v22 = vlaneseq
    %vm23 = vcmp.ge.s32.totalorder %v22, 0
    %vm24 = vcmp.lt.s32.totalorder %v22, 512
    %vm25 = vmand %vm23, %vm24
    %26 = vst.msk [vmem:[#allocation5] sm:$0xf] %vm25, %v21
    // Predicated region
    $region10: #{tpu_custom_call.1} parent=1 // pred_check
      _
    $region11: #{tpu_custom_call.1} parent=1 // pred_check_branch
      %28 = sbr.rel (0) target = $region13
    $region12: #{tpu_custom_call.1} parent=1 // pred_region
      %s30 = ssub.s32 64, 64
      %31 = vsyncadd [#allocation4], %s30
      %s33 = sshll.u32 [#allocation5], 4
      %s34 = int_to_ptr.vmem [resolvable:$true] %s33
      %36 = dma.vmem_to_hbm [thread:$0]  %s34, 64, %s1, [#allocation4]
    $region13: #{tpu_custom_call.1} parent=1 // pred_fallthru
      _
    // Predicated region
    $region14: #{tpu_custom_call.1} parent=1 // pred_check
      _
    $region15: #{tpu_custom_call.1} parent=1 // pred_check_branch
      %38 = sbr.rel (0) target = $region17
    $region16: #{tpu_custom_call.1} parent=1 // pred_region
      %39 = dma.done [#allocation4], 64
    $region17: #{tpu_custom_call.1} parent=1 // pred_fallthru
      _
    %40 = vsyncpa [#allocation3], 1
    %41 = vsyncpa [#allocation4], 1

</llo_original>
